<compile_context>
chip_gen: v7x
topology: tpu7x:2x2x1
jax: 0.10.0
libtpu: 0.0.40
codegen_flags: <defaults>
</compile_context>

<pallas_src>
import functools

import jax
import jax.numpy as jnp
from jax.experimental import pallas as pl
from jax.experimental.pallas import tpu as pltpu


_LANE = 128
_SUBLANE_BF16 = 16          # bf16 packs 16 rows per vreg
_MAX_TILE_B = 2048


def _round_up(n, m):
    return ((n + m - 1) // m) * m


def _cdiv(a, b):
    return (a + b - 1) // b


def _reid_kernel(x_ref, w1_ref, b1_ref, w2_ref, w3_ref, o_ref):
    # Raw f32 activations arrive via DMA; the bf16 cast is free VPU filler.
    x = x_ref[...].astype(jnp.bfloat16)
    # fc1 (bias) + ReLU: bf16 MXU operands, f32 accumulation, f32 epilogue
    # (v5e VPU/EUP have no bf16).
    h1 = jnp.dot(x, w1_ref[...], preferred_element_type=jnp.float32)
    h1 = jnp.maximum(h1 + b1_ref[...], 0.0)
    # fc2 (no bias) + ReLU.
    h2 = jnp.dot(h1.astype(jnp.bfloat16), w2_ref[...],
                 preferred_element_type=jnp.float32)
    h2 = jnp.maximum(h2, 0.0)
    # cls (no bias). Lane-dense (128-wide) bf16 store -> unmasked vst, half
    # the writeback bytes of f32.
    o_ref[...] = jnp.dot(h2.astype(jnp.bfloat16), w3_ref[...],
                         preferred_element_type=jnp.float32).astype(o_ref.dtype)


def prepare_reid_params(w1, b1, w2, w3):
    """Zero-pad weight OUTPUT dims to lane-aligned (128) shapes and cast matmul
    operands to bf16.  w1 keeps its contraction dim at F_IN (a short
    contraction is fine on the MXU and lets x stay unpadded).  Call once at
    init time, not per forward call."""
    f_in, width = w1.shape
    num_classes = w3.shape[1]
    w_pad = _round_up(width, _LANE)
    c_pad = _round_up(num_classes, _LANE)

    w1p = jnp.zeros((f_in, w_pad), jnp.bfloat16).at[:, :width].set(
        w1.astype(jnp.bfloat16))
    b1p = jnp.zeros((1, w_pad), jnp.float32).at[:, :width].set(
        jnp.reshape(b1, (1, width)).astype(jnp.float32))
    w2p = jnp.zeros((w_pad, w_pad), jnp.bfloat16).at[:width, :width].set(
        w2.astype(jnp.bfloat16))
    w3p = jnp.zeros((w_pad, c_pad), jnp.bfloat16).at[:width, :num_classes].set(
        w3.astype(jnp.bfloat16))
    return (w1p, b1p, w2p, w3p), (f_in, width, num_classes)


def _choose_tiling(b):
    """Pick tile_b from the number of tiles (bounds padding waste to <1 tile),
    16-align it for bf16 sublane packing, and prefer >=2 grid steps when the
    batch permits so the 'parallel' axis can shard across both v7x cores."""
    n_tiles = _cdiv(b, _MAX_TILE_B)
    if n_tiles == 1 and b > 2 * _SUBLANE_BF16:
        n_tiles = 2
    tile_b = _round_up(_cdiv(b, n_tiles), _SUBLANE_BF16)
    return n_tiles, tile_b


@functools.partial(jax.jit, static_argnames=("dims", "unpad"))
def reid_forward(x, params, dims, unpad=True):
    """x: [B, F_in] f32; params from prepare_reid_params; dims = (F_in, W, C).

    Returns [B, C] bf16 logits (f32-accumulated) when unpad=True, otherwise the
    padded [B_pad, 128] bf16 slab (padded rows/lanes carry no valid signal)."""
    w1p, b1p, w2p, w3p = params
    f_in, _, num_classes = dims
    c_pad = w3p.shape[1]

    b = x.shape[0]
    n_tiles, tile_b = _choose_tiling(b)
    b_pad = n_tiles * tile_b

    # Batch-pad only (zero rows) when needed; no feature pad, no wrapper cast.
    xp = x if b_pad == b else jnp.pad(x, ((0, b_pad - b), (0, 0)))

    weight_spec = lambda shape: pl.BlockSpec(
        shape, lambda i: (0, 0), memory_space=pltpu.VMEM)

    out = pl.pallas_call(
        _reid_kernel,
        out_shape=jax.ShapeDtypeStruct((b_pad, c_pad), jnp.bfloat16),
        grid=(n_tiles,),
        in_specs=[
            # Full feature dim as the last block dim (== array dim, so legal
            # even though < 128); batch axis is the gridded/tiled axis.
            pl.BlockSpec((tile_b, f_in), lambda i: (i, 0),
                         memory_space=pltpu.VMEM),
            weight_spec(w1p.shape),   # weights VMEM-resident across all tiles
            weight_spec(b1p.shape),
            weight_spec(w2p.shape),
            weight_spec(w3p.shape),
        ],
        out_specs=pl.BlockSpec((tile_b, c_pad), lambda i: (i, 0),
                               memory_space=pltpu.VMEM),
        compiler_params=pltpu.CompilerParams(
            dimension_semantics=("parallel",),   # megacore sharding on v7x
        ),
    )(xp, w1p, b1p, w2p, w3p)

    if unpad:
        # Padded batch rows carry ReLU(b1)-propagated garbage and padded class
        # lanes are zero-weight; slice both off.  If the consumer can take the
        # padded bf16 slab (or fuse this slice), call with unpad=False to skip
        # this extra HBM pass.
        out = out[:b, :num_classes]
    return out


def reid_reference_bf16(x, w1, b1, w2, w3):
    """Pure-JAX reference matching the kernel arithmetic (bf16 matmul
    operands, f32 accumulation and epilogue)."""
    h1 = jnp.dot(x.astype(jnp.bfloat16), w1.astype(jnp.bfloat16),
                 preferred_element_type=jnp.float32)
    h1 = jnp.maximum(h1 + jnp.reshape(b1, (1, -1)).astype(jnp.float32), 0.0)
    h2 = jnp.dot(h1.astype(jnp.bfloat16), w2.astype(jnp.bfloat16),
                 preferred_element_type=jnp.float32)
    h2 = jnp.maximum(h2, 0.0)
    return jnp.dot(h2.astype(jnp.bfloat16), w3.astype(jnp.bfloat16),
                   preferred_element_type=jnp.float32)


if __name__ == "__main__":
    # Small shapes consistent with the module: flat features in, MLP head out.
    B, F_IN, WIDTH, NUM_CLASSES = 8, 32, 32, 16

    key = jax.random.PRNGKey(0)
    kx, k1, kb, k2, k3 = jax.random.split(key, 5)

    x = jax.random.normal(kx, (B, F_IN), dtype=jnp.float32)
    # Deterministic parameter init (LazyLinear in_features inferred = F_IN).
    w1 = jax.random.normal(k1, (F_IN, WIDTH), dtype=jnp.float32) * 0.1
    b1 = jax.random.normal(kb, (WIDTH,), dtype=jnp.float32) * 0.1
    w2 = jax.random.normal(k2, (WIDTH, WIDTH), dtype=jnp.float32) * 0.1
    w3 = jax.random.normal(k3, (WIDTH, NUM_CLASSES), dtype=jnp.float32) * 0.1

    params, dims = prepare_reid_params(w1, b1, w2, w3)
    out = reid_forward(x, params, dims)
    jax.block_until_ready(out)

    assert out.shape == (B, NUM_CLASSES)
    assert out.dtype == jnp.bfloat16
    out_f32 = out.astype(jnp.float32)

    # Tight check against a bf16-matmul / f32-accumulate reference (only extra
    # error source in the kernel is the final bf16 store).
    ref = reid_reference_bf16(x, w1, b1, w2, w3)
    assert jnp.allclose(out_f32, ref, atol=2e-2, rtol=2e-2), float(
        jnp.max(jnp.abs(out_f32 - ref)))

    # Looser sanity check against the pure-f32 module semantics.
    ref_f32 = jnp.maximum(jnp.maximum(x @ w1 + b1, 0.0) @ w2, 0.0) @ w3
    assert jnp.allclose(out_f32, ref_f32, atol=6e-2, rtol=6e-2)

    print("KERNEL_OK")
</pallas_src>

<mosaic_0001>
module attributes {stable_mosaic.version = 11 : i64} {
  func.func @_reid_kernel(%arg0: i32, %arg1: memref<16x32xf32, #tpu.memory_space<vmem>>, %arg2: memref<32x128xbf16, #tpu.memory_space<vmem>>, %arg3: memref<1x128xf32, #tpu.memory_space<vmem>>, %arg4: memref<128x128xbf16, #tpu.memory_space<vmem>>, %arg5: memref<128x128xbf16, #tpu.memory_space<vmem>>, %arg6: memref<16x128xbf16, #tpu.memory_space<vmem>>) attributes {dimension_semantics = [#tpu.dimension_semantics<parallel>], iteration_bounds = array<i64: 1>, scalar_prefetch = 0 : i64, scratch_operands = 0 : i64, tpu.core_type = #tpu.core_type<tc>, window_params = [{transform_indices = @transform_0, window_bounds = array<i64: 16, 32>}, {pipeline_mode = #tpu.pipeline_mode<synchronous>, transform_indices = @transform_1, window_bounds = array<i64: 32, 128>}, {pipeline_mode = #tpu.pipeline_mode<synchronous>, transform_indices = @transform_2, window_bounds = array<i64: 1, 128>}, {pipeline_mode = #tpu.pipeline_mode<synchronous>, transform_indices = @transform_3, window_bounds = array<i64: 128, 128>}, {pipeline_mode = #tpu.pipeline_mode<synchronous>, transform_indices = @transform_4, window_bounds = array<i64: 128, 128>}, {transform_indices = @transform_5, window_bounds = array<i64: 16, 128>}]} {
    %c0 = arith.constant 0 : index
    %c0_0 = arith.constant 0 : index
    %0 = vector.load %arg1[%c0, %c0_0] : memref<16x32xf32, #tpu.memory_space<vmem>>, vector<16x32xf32>
    %1 = arith.truncf %0 : vector<16x32xf32> to vector<16x32xbf16>
    %c0_1 = arith.constant 0 : index
    %c0_2 = arith.constant 0 : index
    %2 = vector.load %arg2[%c0_1, %c0_2] : memref<32x128xbf16, #tpu.memory_space<vmem>>, vector<32x128xbf16>
    %cst = arith.constant dense<0.000000e+00> : vector<16x128xf32>
    %3 = tpu.matmul %1, %2, %cst {dimension_numbers = #tpu.dot_dimension_numbers<[1], [0], [0], [1], [0, 0, 1, 1], [], []>} : vector<16x32xbf16>, vector<32x128xbf16>, vector<16x128xf32> -> vector<16x128xf32>
    %c0_3 = arith.constant 0 : index
    %c0_4 = arith.constant 0 : index
    %4 = vector.load %arg3[%c0_3, %c0_4] : memref<1x128xf32, #tpu.memory_space<vmem>>, vector<1x128xf32>
    %5 = vector.broadcast %4 : vector<1x128xf32> to vector<16x128xf32>
    %6 = arith.addf %3, %5 : vector<16x128xf32>
    %cst_5 = arith.constant 0.000000e+00 : f32
    %7 = vector.broadcast %cst_5 : f32 to vector<16x128xf32>
    %8 = arith.maximumf %6, %7 : vector<16x128xf32>
    %9 = arith.truncf %8 : vector<16x128xf32> to vector<16x128xbf16>
    %c0_6 = arith.constant 0 : index
    %c0_7 = arith.constant 0 : index
    %10 = vector.load %arg4[%c0_6, %c0_7] : memref<128x128xbf16, #tpu.memory_space<vmem>>, vector<128x128xbf16>
    %cst_8 = arith.constant dense<0.000000e+00> : vector<16x128xf32>
    %11 = tpu.matmul %9, %10, %cst_8 {dimension_numbers = #tpu.dot_dimension_numbers<[1], [0], [0], [1], [0, 0, 1, 1], [], []>} : vector<16x128xbf16>, vector<128x128xbf16>, vector<16x128xf32> -> vector<16x128xf32>
    %cst_9 = arith.constant 0.000000e+00 : f32
    %12 = vector.broadcast %cst_9 : f32 to vector<16x128xf32>
    %13 = arith.maximumf %11, %12 : vector<16x128xf32>
    %14 = arith.truncf %13 : vector<16x128xf32> to vector<16x128xbf16>
    %c0_10 = arith.constant 0 : index
    %c0_11 = arith.constant 0 : index
    %15 = vector.load %arg5[%c0_10, %c0_11] : memref<128x128xbf16, #tpu.memory_space<vmem>>, vector<128x128xbf16>
    %cst_12 = arith.constant dense<0.000000e+00> : vector<16x128xf32>
    %16 = tpu.matmul %14, %15, %cst_12 {dimension_numbers = #tpu.dot_dimension_numbers<[1], [0], [0], [1], [0, 0, 1, 1], [], []>} : vector<16x128xbf16>, vector<128x128xbf16>, vector<16x128xf32> -> vector<16x128xf32>
    %17 = arith.truncf %16 : vector<16x128xf32> to vector<16x128xbf16>
    %c0_13 = arith.constant 0 : index
    %c0_14 = arith.constant 0 : index
    %18 = vector.load %arg6[%c0_13, %c0_14] : memref<16x128xbf16, #tpu.memory_space<vmem>>, vector<16x128xbf16>
    tpu.vector_store %arg6[%c0_13, %c0_14], %17 {strides = array<i32>} : memref<16x128xbf16, #tpu.memory_space<vmem>>, vector<16x128xbf16>,
    return
  }
  func.func @transform_0(%arg0: i32) -> (i32, i32) {
    %c0_i32 = arith.constant 0 : i32
    %c0_i32_0 = arith.constant 0 : i32
    return %arg0, %c0_i32 : i32, i32
  }
  func.func @transform_1(%arg0: i32) -> (i32, i32) {
    %c0_i32 = arith.constant 0 : i32
    %c0_i32_0 = arith.constant 0 : i32
    %c0_i32_1 = arith.constant 0 : i32
    return %c0_i32, %c0_i32_0 : i32, i32
  }
  func.func @transform_2(%arg0: i32) -> (i32, i32) {
    %c0_i32 = arith.constant 0 : i32
    %c0_i32_0 = arith.constant 0 : i32
    %c0_i32_1 = arith.constant 0 : i32
    return %c0_i32, %c0_i32_0 : i32, i32
  }
  func.func @transform_3(%arg0: i32) -> (i32, i32) {
    %c0_i32 = arith.constant 0 : i32
    %c0_i32_0 = arith.constant 0 : i32
    %c0_i32_1 = arith.constant 0 : i32
    return %c0_i32, %c0_i32_0 : i32, i32
  }
  func.func @transform_4(%arg0: i32) -> (i32, i32) {
    %c0_i32 = arith.constant 0 : i32
    %c0_i32_0 = arith.constant 0 : i32
    %c0_i32_1 = arith.constant 0 : i32
    return %c0_i32, %c0_i32_0 : i32, i32
  }
  func.func @transform_5(%arg0: i32) -> (i32, i32) {
    %c0_i32 = arith.constant 0 : i32
    %c0_i32_0 = arith.constant 0 : i32
    return %arg0, %c0_i32 : i32, i32
  }
}

</mosaic_0001>

<llo_original>
// kernel: reid_forward.1
$region0: #{reid_forward.1}
  #allocation0 [shape = 'u32[]', space=smem, size = 0x4, offset = 0x4, fixed_abs, tag = 'smem constant byte address 0x4 - core index']
  #allocation1 [shape = 'u32[144,128]{1,0:T(1,128)}', space=vmem, size = 0x12000, scoped, tag = 'internal scratch']
  %s0 = inlined_call_operand.vmem [shape: f32[16,32], index: 0, kind: input, shape index: {}]
  %s1 = inlined_call_operand.vmem [shape: bf16[32,128], index: 1, kind: input, shape index: {}]
  %s2 = inlined_call_operand.vmem [shape: f32[1,128], index: 2, kind: input, shape index: {}]
  %s3 = inlined_call_operand.hbm [shape: bf16[128,128], index: 3, kind: input, shape index: {}]
  %s4 = inlined_call_operand.hbm [shape: bf16[128,128], index: 4, kind: input, shape index: {}]
  %s5 = inlined_call_operand.vmem [shape: bf16[16,128], index: 5, kind: output, shape index: {}]
  %s6 = sld [smem:[#allocation0]]
  $region38: #{reid_forward.1} parent=0
    _
  %s8 = ssub.s32 1, %s6
  %s9 = scalar_select 0, %s8, %s6
  $region1: #{reid_forward.1} parent=0
    #allocation2 [shape = 'u8[32768]{0}', space=vmem, size = 0x8000, scoped, tag = 'input window, operand 3, single buffered']
    #allocation3 [shape = 's32[1]{0}', space=sflag, size = 0x4, scoped, tag = 'scoped memory for reid_forward.1']
    #allocation4 [shape = 'u8[32768]{0}', space=vmem, size = 0x8000, scoped, tag = 'input window, operand 4, single buffered']
    #allocation5 [shape = 's32[1]{0}', space=sflag, size = 0x4, scoped, tag = 'scoped memory for reid_forward.1']
    %10 = vsyncpa [#allocation3], 0
    %11 = vsyncpa [#allocation5], 0
    // Predicated region
    $region2: #{reid_forward.1} parent=1 // pred_check
      _
    $region3: #{reid_forward.1} parent=1 // pred_check_branch
      %13 = sbr.rel (0) target = $region5
    $region4: #{reid_forward.1} parent=1 // pred_region
      _
    $region5: #{reid_forward.1} parent=1 // pred_fallthru
      _
    // Predicated region
    $region6: #{reid_forward.1} parent=1 // pred_check
      _
    $region7: #{reid_forward.1} parent=1 // pred_check_branch
      %15 = sbr.rel (0) target = $region9
    $region8: #{reid_forward.1} parent=1 // pred_region
      _
    $region9: #{reid_forward.1} parent=1 // pred_fallthru
      _
    // Predicated region
    $region10: #{reid_forward.1} parent=1 // pred_check
      _
    $region11: #{reid_forward.1} parent=1 // pred_check_branch
      %17 = sbr.rel (0) target = $region13
    $region12: #{reid_forward.1} parent=1 // pred_region
      _
    $region13: #{reid_forward.1} parent=1 // pred_fallthru
      _
    // Predicated region
    $region14: #{reid_forward.1} parent=1 // pred_check
      _
    $region15: #{reid_forward.1} parent=1 // pred_check_branch
      %19 = sbr.rel (0) target = $region17
    $region16: #{reid_forward.1} parent=1 // pred_region
      %s21 = ssub.s32 1024, 1024
      %22 = vsyncadd [#allocation3], %s21
      %s23 = sshll.u32 [#allocation2], 4
      %s24 = int_to_ptr.vmem [resolvable:$true] %s23
      %29 = dma.hbm_to_vmem [thread:$0]  %s3, 1024, %s24, [#allocation3], 64, 64, 4
    $region17: #{reid_forward.1} parent=1 // pred_fallthru
      _
    // Predicated region
    $region18: #{reid_forward.1} parent=1 // pred_check
      _
    $region19: #{reid_forward.1} parent=1 // pred_check_branch
      %31 = sbr.rel (0) target = $region21
    $region20: #{reid_forward.1} parent=1 // pred_region
      %s33 = ssub.s32 1024, 1024
      %34 = vsyncadd [#allocation5], %s33
      %s35 = sshll.u32 [#allocation4], 4
      %s36 = int_to_ptr.vmem [resolvable:$true] %s35
      %41 = dma.hbm_to_vmem [thread:$0]  %s4, 1024, %s36, [#allocation5], 64, 64, 4
    $region21: #{reid_forward.1} parent=1 // pred_fallthru
      _
    // Predicated region
    $region22: #{reid_forward.1} parent=1 // pred_check
      _
    $region23: #{reid_forward.1} parent=1 // pred_check_branch
      %43 = sbr.rel (0) target = $region25
    $region24: #{reid_forward.1} parent=1 // pred_region
      %44 = dma.done [#allocation3], 1024
    $region25: #{reid_forward.1} parent=1 // pred_fallthru
      _
    // Predicated region
    $region26: #{reid_forward.1} parent=1 // pred_check
      _
    $region27: #{reid_forward.1} parent=1 // pred_check_branch
      %46 = sbr.rel (0) target = $region29
    $region28: #{reid_forward.1} parent=1 // pred_region
      %47 = dma.done [#allocation5], 1024
    $region29: #{reid_forward.1} parent=1 // pred_fallthru
      _
    %v49 = vld [vmem:[%s0] sm:$0xff]
    %v50 = vld [vmem:[%s0 + $0x8] sm:$0xff]
    %v51 = vpack.c.bf16 %v50, %v49
    %v52 = vld [vmem:[%s1] sm:$0xf]
    %v53 = vld [vmem:[%s1 + $0x4] sm:$0xf]
    %v54 = vld [vmem:[%s1 + $0x8] sm:$0xf]
    %v55 = vld [vmem:[%s1 + $0xc] sm:$0xf]
    %v56 = vld [vmem:[%s2] sm:$0x1]
    %v58 = vlaneseq
    %v59 = vshrl.u32 %v58, 7
    %v60 = vsub.s32 0, %v59
    %v61 = vrot.slane %v56, %v60
    %v67 = vunpack.c.l.b16 %v52
    %v68 = vunpack.c.l.b16 %v53
    %v69 = vunpack.c.l.b16 %v54
    %v70 = vunpack.c.l.b16 %v55
    %v71 = vpack.c.b16 %v68, %v67
    %v72 = vpack.c.b16 %v70, %v69
    %vm75 = vcmask 261120
    %v77 = vsel %vm75, %v51, 0
    %79 = vmatprep.subr.bf16.mxu0 0
    %80 = vmatpush1.bf16.msra.mxu0 %v71
    %81 = vmatprep.subr.bf16.mxu0 0
    %82 = vmatpush1.bf16.msra.mxu0 %v72
    %83 = vmatprep.subr.bf16.mxu0 0
    %84 = vmatpush1.bf16.msra.mxu0 0
    %85 = vmatprep.subr.bf16.mxu0 0
    %86 = vmatpush1.bf16.msra.mxu0 0
    %87 = vmatprep.subr.bf16.mxu0 0
    %88 = vmatpush1.bf16.msra.mxu0 0
    %89 = vmatprep.subr.bf16.mxu0 0
    %90 = vmatpush1.bf16.msra.mxu0 0
    %91 = vmatprep.subr.bf16.mxu0 0
    %92 = vmatpush1.bf16.msra.mxu0 0
    %93 = vmatprep.subr.bf16.mxu0 0
    %94 = vmatpush1.bf16.msra.mxu0 0
    %95 = vmatprep.subr.bf16.mxu0 0
    %96 = vmatpush1.bf16.msra.mxu0 0
    %97 = vmatprep.subr.bf16.mxu0 0
    %98 = vmatpush1.bf16.msra.mxu0 0
    %99 = vmatprep.subr.bf16.mxu0 0
    %100 = vmatpush1.bf16.msra.mxu0 0
    %101 = vmatprep.subr.bf16.mxu0 0
    %102 = vmatpush1.bf16.msra.mxu0 0
    %103 = vmatprep.subr.bf16.mxu0 0
    %104 = vmatpush1.bf16.msra.mxu0 0
    %105 = vmatprep.subr.bf16.mxu0 0
    %106 = vmatpush1.bf16.msra.mxu0 0
    %107 = vmatprep.subr.bf16.mxu0 0
    %108 = vmatpush1.bf16.msra.mxu0 0
    %109 = vmatprep.subr.bf16.mxu0 0
    %110 = vmatpush1.bf16.msra.mxu0 0
    %111 = vmatprep.mubr.bf16.mxu0 0
    %112 = vmatmul.mubr.bf16.gmra.mrb[0].mxu0 %v77
    %v113 = vpop.f32.mrb[0].mxu0
    %v114 = vadd.f32 %v61, %v113
    %v115 = vpop.f32.mrb[0].mxu0
    %v116 = vpop.f32.mrb[0].mxu0
    %v117 = vadd.f32 %v61, %v116
    %v118 = vpop.f32.mrb[0].mxu0
    %119 = vdwg.mxu0
    %v120 = vmax.f32 %v114, 0.0
    %v121 = vmax.f32 %v117, 0.0
    %v122 = vpack.c.bf16 %v121, %v120
    %v123 = vld [vmem:[#allocation2] sm:$0xf]
    %v124 = vld [vmem:[#allocation2 + $0x4] sm:$0xf]
    %v125 = vld [vmem:[#allocation2 + $0x8] sm:$0xf]
    %v126 = vld [vmem:[#allocation2 + $0xc] sm:$0xf]
    %v127 = vld [vmem:[#allocation2 + $0x10] sm:$0xf]
    %v128 = vld [vmem:[#allocation2 + $0x14] sm:$0xf]
    %v129 = vld [vmem:[#allocation2 + $0x18] sm:$0xf]
    %v130 = vld [vmem:[#allocation2 + $0x1c] sm:$0xf]
    %v131 = vld [vmem:[#allocation2 + $0x20] sm:$0xf]
    %v132 = vld [vmem:[#allocation2 + $0x24] sm:$0xf]
    %v133 = vld [vmem:[#allocation2 + $0x28] sm:$0xf]
    %v134 = vld [vmem:[#allocation2 + $0x2c] sm:$0xf]
    %v135 = vld [vmem:[#allocation2 + $0x30] sm:$0xf]
    %v136 = vld [vmem:[#allocation2 + $0x34] sm:$0xf]
    %v137 = vld [vmem:[#allocation2 + $0x38] sm:$0xf]
    %v138 = vld [vmem:[#allocation2 + $0x3c] sm:$0xf]
    %v155 = vunpack.c.l.b16 %v123
    %v156 = vunpack.c.l.b16 %v124
    %v157 = vunpack.c.l.b16 %v125
    %v158 = vunpack.c.l.b16 %v126
    %v159 = vunpack.c.l.b16 %v127
    %v160 = vunpack.c.l.b16 %v128
    %v161 = vunpack.c.l.b16 %v129
    %v162 = vunpack.c.l.b16 %v130
    %v163 = vunpack.c.l.b16 %v131
    %v164 = vunpack.c.l.b16 %v132
    %v165 = vunpack.c.l.b16 %v133
    %v166 = vunpack.c.l.b16 %v134
    %v167 = vunpack.c.l.b16 %v135
    %v168 = vunpack.c.l.b16 %v136
    %v169 = vunpack.c.l.b16 %v137
    %v170 = vunpack.c.l.b16 %v138
    %v171 = vpack.c.b16 %v156, %v155
    %v172 = vpack.c.b16 %v158, %v157
    %v173 = vpack.c.b16 %v160, %v159
    %v174 = vpack.c.b16 %v162, %v161
    %v175 = vpack.c.b16 %v164, %v163
    %v176 = vpack.c.b16 %v166, %v165
    %v177 = vpack.c.b16 %v168, %v167
    %v178 = vpack.c.b16 %v170, %v169
    %187 = vmatprep.subr.bf16.mxu0 0
    %188 = vmatpush1.bf16.msra.mxu0 %v171
    %189 = vmatprep.subr.bf16.mxu0 0
    %190 = vmatpush1.bf16.msra.mxu0 %v172
    %191 = vmatprep.subr.bf16.mxu0 0
    %192 = vmatpush1.bf16.msra.mxu0 %v173
    %193 = vmatprep.subr.bf16.mxu0 0
    %194 = vmatpush1.bf16.msra.mxu0 %v174
    %195 = vmatprep.subr.bf16.mxu0 0
    %196 = vmatpush1.bf16.msra.mxu0 %v175
    %197 = vmatprep.subr.bf16.mxu0 0
    %198 = vmatpush1.bf16.msra.mxu0 %v176
    %199 = vmatprep.subr.bf16.mxu0 0
    %200 = vmatpush1.bf16.msra.mxu0 %v177
    %201 = vmatprep.subr.bf16.mxu0 0
    %202 = vmatpush1.bf16.msra.mxu0 %v178
    %203 = vmatprep.subr.bf16.mxu0 0
    %204 = vmatpush1.bf16.msra.mxu0 0
    %205 = vmatprep.subr.bf16.mxu0 0
    %206 = vmatpush1.bf16.msra.mxu0 0
    %207 = vmatprep.subr.bf16.mxu0 0
    %208 = vmatpush1.bf16.msra.mxu0 0
    %209 = vmatprep.subr.bf16.mxu0 0
    %210 = vmatpush1.bf16.msra.mxu0 0
    %211 = vmatprep.subr.bf16.mxu0 0
    %212 = vmatpush1.bf16.msra.mxu0 0
    %213 = vmatprep.subr.bf16.mxu0 0
    %214 = vmatpush1.bf16.msra.mxu0 0
    %215 = vmatprep.subr.bf16.mxu0 0
    %216 = vmatpush1.bf16.msra.mxu0 0
    %217 = vmatprep.subr.bf16.mxu0 0
    %218 = vmatpush1.bf16.msra.mxu0 0
    %219 = vmatprep.mubr.bf16.mxu0 0
    %220 = vmatmul.mubr.bf16.gmra.mrb[0].mxu0 %v122
    %v221 = vpop.f32.mrb[0].mxu0
    %v222 = vadd.f32 0.0, %v221
    %v223 = vpop.f32.mrb[0].mxu0
    %v224 = vpop.f32.mrb[0].mxu0
    %v225 = vadd.f32 0.0, %v224
    %v226 = vpop.f32.mrb[0].mxu0
    %227 = vdwg.mxu0
    %v228 = vmax.f32 %v222, 0.0
    %v229 = vmax.f32 %v225, 0.0
    %v230 = vpack.c.bf16 %v229, %v228
    %v231 = vld [vmem:[#allocation4] sm:$0xf]
    %v232 = vld [vmem:[#allocation4 + $0x4] sm:$0xf]
    %v233 = vld [vmem:[#allocation4 + $0x8] sm:$0xf]
    %v234 = vld [vmem:[#allocation4 + $0xc] sm:$0xf]
    %v235 = vld [vmem:[#allocation4 + $0x10] sm:$0xf]
    %v236 = vld [vmem:[#allocation4 + $0x14] sm:$0xf]
    %v237 = vld [vmem:[#allocation4 + $0x18] sm:$0xf]
    %v238 = vld [vmem:[#allocation4 + $0x1c] sm:$0xf]
    %v239 = vld [vmem:[#allocation4 + $0x20] sm:$0xf]
    %v240 = vld [vmem:[#allocation4 + $0x24] sm:$0xf]
    %v241 = vld [vmem:[#allocation4 + $0x28] sm:$0xf]
    %v242 = vld [vmem:[#allocation4 + $0x2c] sm:$0xf]
    %v243 = vld [vmem:[#allocation4 + $0x30] sm:$0xf]
    %v244 = vld [vmem:[#allocation4 + $0x34] sm:$0xf]
    %v245 = vld [vmem:[#allocation4 + $0x38] sm:$0xf]
    %v246 = vld [vmem:[#allocation4 + $0x3c] sm:$0xf]
    %v263 = vunpack.c.l.b16 %v231
    %v264 = vunpack.c.l.b16 %v232
    %v265 = vunpack.c.l.b16 %v233
    %v266 = vunpack.c.l.b16 %v234
    %v267 = vunpack.c.l.b16 %v235
    %v268 = vunpack.c.l.b16 %v236
    %v269 = vunpack.c.l.b16 %v237
    %v270 = vunpack.c.l.b16 %v238
    %v271 = vunpack.c.l.b16 %v239
    %v272 = vunpack.c.l.b16 %v240
    %v273 = vunpack.c.l.b16 %v241
    %v274 = vunpack.c.l.b16 %v242
    %v275 = vunpack.c.l.b16 %v243
    %v276 = vunpack.c.l.b16 %v244
    %v277 = vunpack.c.l.b16 %v245
    %v278 = vunpack.c.l.b16 %v246
    %v279 = vpack.c.b16 %v264, %v263
    %v280 = vpack.c.b16 %v266, %v265
    %v281 = vpack.c.b16 %v268, %v267
    %v282 = vpack.c.b16 %v270, %v269
    %v283 = vpack.c.b16 %v272, %v271
    %v284 = vpack.c.b16 %v274, %v273
    %v285 = vpack.c.b16 %v276, %v275
    %v286 = vpack.c.b16 %v278, %v277
    %295 = vmatprep.subr.bf16.mxu0 0
    %296 = vmatpush1.bf16.msra.mxu0 %v279
    %297 = vmatprep.subr.bf16.mxu0 0
    %298 = vmatpush1.bf16.msra.mxu0 %v280
    %299 = vmatprep.subr.bf16.mxu0 0
    %300 = vmatpush1.bf16.msra.mxu0 %v281
    %301 = vmatprep.subr.bf16.mxu0 0
    %302 = vmatpush1.bf16.msra.mxu0 %v282
    %303 = vmatprep.subr.bf16.mxu0 0
    %304 = vmatpush1.bf16.msra.mxu0 %v283
    %305 = vmatprep.subr.bf16.mxu0 0
    %306 = vmatpush1.bf16.msra.mxu0 %v284
    %307 = vmatprep.subr.bf16.mxu0 0
    %308 = vmatpush1.bf16.msra.mxu0 %v285
    %309 = vmatprep.subr.bf16.mxu0 0
    %310 = vmatpush1.bf16.msra.mxu0 %v286
    %311 = vmatprep.subr.bf16.mxu0 0
    %312 = vmatpush1.bf16.msra.mxu0 0
    %313 = vmatprep.subr.bf16.mxu0 0
    %314 = vmatpush1.bf16.msra.mxu0 0
    %315 = vmatprep.subr.bf16.mxu0 0
    %316 = vmatpush1.bf16.msra.mxu0 0
    %317 = vmatprep.subr.bf16.mxu0 0
    %318 = vmatpush1.bf16.msra.mxu0 0
    %319 = vmatprep.subr.bf16.mxu0 0
    %320 = vmatpush1.bf16.msra.mxu0 0
    %321 = vmatprep.subr.bf16.mxu0 0
    %322 = vmatpush1.bf16.msra.mxu0 0
    %323 = vmatprep.subr.bf16.mxu0 0
    %324 = vmatpush1.bf16.msra.mxu0 0
    %325 = vmatprep.subr.bf16.mxu0 0
    %326 = vmatpush1.bf16.msra.mxu0 0
    %327 = vmatprep.mubr.bf16.mxu0 0
    %328 = vmatmul.mubr.bf16.gmra.mrb[0].mxu0 %v230
    %v329 = vpop.f32.mrb[0].mxu0
    %v330 = vadd.f32 0.0, %v329
    %v331 = vpop.f32.mrb[0].mxu0
    %v332 = vpop.f32.mrb[0].mxu0
    %v333 = vadd.f32 0.0, %v332
    %v334 = vpop.f32.mrb[0].mxu0
    %335 = vdwg.mxu0
    %v336 = vpack.c.bf16 %v333, %v330
    %v338 = vunpack.c.l.b16 %v336
    %v339 = vunpack.c.h.b16 %v336
    %v340 = vpack.c.b16 %v338, %v338
    %v341 = vpack.c.b16 %v339, %v339
    %344 = vst [vmem:[%s5] sm:$0xf] %v340
    %345 = vst [vmem:[%s5 + $0x4] sm:$0xf] %v341
    // Predicated region
    $region30: #{reid_forward.1} parent=1 // pred_check
      _
    $region31: #{reid_forward.1} parent=1 // pred_check_branch
      %347 = sbr.rel (0) target = $region33
    $region32: #{reid_forward.1} parent=1 // pred_region
      _
    $region33: #{reid_forward.1} parent=1 // pred_fallthru
      _
    // Predicated region
    $region34: #{reid_forward.1} parent=1 // pred_check
      _
    $region35: #{reid_forward.1} parent=1 // pred_check_branch
      %349 = sbr.rel (0) target = $region37
    $region36: #{reid_forward.1} parent=1 // pred_region
      _
    $region37: #{reid_forward.1} parent=1 // pred_fallthru
      _
    %350 = vsyncpa [#allocation3], 1
    %351 = vsyncpa [#allocation5], 1

</llo_original>
